<compile_context>
chip_gen: v7x
topology: tpu7x:2x2x1
jax: 0.10.0
libtpu: 0.0.40
codegen_flags: <defaults>
</compile_context>

<pallas_src>
import jax
import jax.numpy as jnp
from jax import lax
from jax.experimental import pallas as pl
from jax.experimental.pallas import tpu as pltpu


def _sort2(a, b):
    return jnp.minimum(a, b), jnp.maximum(a, b)


def _median9(vals):
    """Exact median of 9 arrays via the classic 19-exchange sorting network."""
    p = list(vals)

    def s(i, j):
        p[i], p[j] = _sort2(p[i], p[j])

    s(1, 2); s(4, 5); s(7, 8)
    s(0, 1); s(3, 4); s(6, 7)
    s(1, 2); s(4, 5); s(7, 8)
    s(0, 3); s(5, 8); s(4, 7)
    s(3, 6); s(1, 4); s(2, 5)
    s(4, 7); s(4, 2); s(6, 4); s(4, 2)
    return p[4]


def _reverse_via_rolls(x, axis, idx, length, period):
    """Reverse `x` within each `period`-aligned block along `axis`.

    Reversing a power-of-two block is the composition of index-bit flips; each
    bit flip is two rolls + one select (XLU + VPU only — no MXU, no (N,N)
    permutation matrices).  `idx` is an iota along `axis`; `length` is the full
    axis extent (>= period, period-aligned blocks).
    """
    bit = 1
    while bit < period:
        fwd = pltpu.roll(x, shift=bit, axis=axis)            # fwd[j] = x[j - bit]
        bwd = pltpu.roll(x, shift=length - bit, axis=axis)   # bwd[j] = x[j + bit]
        x = jnp.where((idx & bit) != 0, fwd, bwd)
        bit *= 2
    return x


def _make_kernel(C, H, W):
    L = C * W  # packed lane dimension

    def kernel(flags_ref, x_ref, o_ref):
        b = pl.program_id(0)
        hflip = flags_ref[b, 0]
        vflip = flags_ref[b, 1]
        blur = flags_ref[b, 2]

        # Output block doubles as the working buffer (stays VMEM resident).
        o_ref[0] = x_ref[0]                       # (H, C*W)

        @pl.when(hflip == 1)                      # reverse W inside each channel block
        def _():
            lane = lax.broadcasted_iota(jnp.int32, (H, L), 1)
            o_ref[0] = _reverse_via_rolls(o_ref[0], axis=1, idx=lane,
                                          length=L, period=W)

        @pl.when(vflip == 1)                      # reverse H (sublanes)
        def _():
            row = lax.broadcasted_iota(jnp.int32, (H, L), 0)
            o_ref[0] = _reverse_via_rolls(o_ref[0], axis=0, idx=row,
                                          length=H, period=H)

        @pl.when(blur == 1)                       # 3x3 zero-padded exact median
        def _():
            x = o_ref[0]
            row = lax.broadcasted_iota(jnp.int32, (H, L), 0)
            col = lax.broadcasted_iota(jnp.int32, (H, L), 1) & (W - 1)
            planes = []
            for dy in (-1, 0, 1):
                if dy == 0:
                    r = x
                else:
                    r = pltpu.roll(x, shift=(-dy) % H, axis=0)
                    rmask = (row >= 1) if dy == -1 else (row <= H - 2)
                    r = jnp.where(rmask, r, 0.0)
                for dx in (-1, 0, 1):
                    if dx == 0:
                        planes.append(r)
                    else:
                        s = pltpu.roll(r, shift=(-dx) % L, axis=1)
                        cmask = (col >= 1) if dx == -1 else (col <= W - 2)
                        planes.append(jnp.where(cmask, s, 0.0))
            o_ref[0] = _median9(planes)

    return kernel


def data_augmentation(x, flags):
    """x: (B, C, H, W) float32, flags: (B, 3) int32 in {0,1} = [hflip, vflip, blur]."""
    B, C, H, W = x.shape
    # Roll-based reversal / lane packing assumes power-of-two spatial dims.
    # TODO(synk): for general H/W use lax.rev once Mosaic supports it; for large
    # images strip-tile H (1-row halo) and set vmem_limit_bytes for v7x's 64 MiB VMEM.
    assert H & (H - 1) == 0 and W & (W - 1) == 0, "H and W must be powers of two"
    L = C * W

    # Lane-dense packing: present each sample as a single (H, C*W) plane.
    xp = jnp.transpose(x, (0, 2, 1, 3)).reshape(B, H, L)

    grid_spec = pltpu.PrefetchScalarGridSpec(
        num_scalar_prefetch=1,
        grid=(B,),
        in_specs=[pl.BlockSpec((1, H, L), lambda b, flags: (b, 0, 0))],
        out_specs=pl.BlockSpec((1, H, L), lambda b, flags: (b, 0, 0)),
    )
    out = pl.pallas_call(
        _make_kernel(C, H, W),
        out_shape=jax.ShapeDtypeStruct((B, H, L), x.dtype),
        grid_spec=grid_spec,
        compiler_params=pltpu.CompilerParams(
            dimension_semantics=("parallel",)),
    )(flags, xp)

    return jnp.transpose(out.reshape(B, H, C, W), (0, 2, 1, 3))


def _reference(x, flags):
    """Pure-JAX reference of the same augmentation pipeline."""
    B, C, H, W = x.shape
    hflip = (flags[:, 0] == 1)[:, None, None, None]
    vflip = (flags[:, 1] == 1)[:, None, None, None]
    blur = (flags[:, 2] == 1)[:, None, None, None]
    xf = jnp.where(hflip, x[..., ::-1], x)
    xf = jnp.where(vflip, xf[..., ::-1, :], xf)
    xp = jnp.pad(xf, ((0, 0), (0, 0), (1, 1), (1, 1)))
    patches = jnp.stack(
        [xp[:, :, 1 + dy:1 + dy + H, 1 + dx:1 + dx + W]
         for dy in (-1, 0, 1) for dx in (-1, 0, 1)], axis=0)
    med = jnp.sort(patches, axis=0)[4]
    return jnp.where(blur, med, xf)


if __name__ == "__main__":
    key = jax.random.PRNGKey(0)
    kx, kf = jax.random.split(key)
    B, C, H, W = 2, 4, 16, 16
    x = jax.random.normal(kx, (B, C, H, W), dtype=jnp.float32)

    # per-sample Bernoulli(0.5) decisions for [hflip, vflip, median_blur]
    flags_rand = jax.random.bernoulli(kf, 0.5, (B, 3)).astype(jnp.int32)
    # plus a deterministic set that exercises every on/off branch at runtime
    flags_cov = jnp.array([[1, 1, 1], [0, 1, 0]], dtype=jnp.int32)

    for flags in (flags_rand, flags_cov):
        out = data_augmentation(x, flags)
        jax.block_until_ready(out)
        ref = _reference(x, flags)
        assert out.shape == x.shape and out.dtype == x.dtype
        assert jnp.allclose(out, ref, atol=1e-5), "Pallas kernel mismatch vs JAX reference"
    print("KERNEL_OK")
</pallas_src>

<mosaic_0001>
module attributes {stable_mosaic.version = 11 : i64} {
  func.func @kernel(%arg0: i32, %arg1: memref<2x3xi32, #tpu.memory_space<smem>>, %arg2: memref<1x16x64xf32, #tpu.memory_space<vmem>>, %arg3: memref<1x16x64xf32, #tpu.memory_space<vmem>>) attributes {dimension_semantics = [#tpu.dimension_semantics<parallel>], iteration_bounds = array<i64: 2>, scalar_prefetch = 1 : i64, scratch_operands = 0 : i64, tpu.core_type = #tpu.core_type<tc>, window_params = [{transform_indices = @transform_0, window_bounds = array<i64: 1, 16, 64>}, {transform_indices = @transform_1, window_bounds = array<i64: 1, 16, 64>}]} {
    %0 = arith.index_cast %arg0 : i32 to index
    %c0 = arith.constant 0 : index
    %1 = memref.load %arg1[%0, %c0] : memref<2x3xi32, #tpu.memory_space<smem>>
    %2 = arith.index_cast %arg0 : i32 to index
    %c1 = arith.constant 1 : index
    %3 = memref.load %arg1[%2, %c1] : memref<2x3xi32, #tpu.memory_space<smem>>
    %4 = arith.index_cast %arg0 : i32 to index
    %c2 = arith.constant 2 : index
    %5 = memref.load %arg1[%4, %c2] : memref<2x3xi32, #tpu.memory_space<smem>>
    %c0_0 = arith.constant 0 : index
    %c0_1 = arith.constant 0 : index
    %c0_2 = arith.constant 0 : index
    %6 = vector.load %arg2[%c0_0, %c0_1, %c0_2] : memref<1x16x64xf32, #tpu.memory_space<vmem>>, vector<1x16x64xf32>
    %7 = vector.shape_cast %6 : vector<1x16x64xf32> to vector<16x64xf32>
    %c0_3 = arith.constant 0 : index
    %c0_4 = arith.constant 0 : index
    %c0_5 = arith.constant 0 : index
    %8 = vector.load %arg3[%c0_3, %c0_4, %c0_5] : memref<1x16x64xf32, #tpu.memory_space<vmem>>, vector<1x16x64xf32>
    %9 = vector.shape_cast %8 : vector<1x16x64xf32> to vector<16x64xf32>
    %10 = vector.shape_cast %7 : vector<16x64xf32> to vector<1x16x64xf32>
    tpu.vector_store %arg3[%c0_3, %c0_4, %c0_5], %10 {strides = array<i32>} : memref<1x16x64xf32, #tpu.memory_space<vmem>>, vector<1x16x64xf32>,
    %c1_i32 = arith.constant 1 : i32
    %11 = arith.cmpi eq, %1, %c1_i32 : i32
    %12 = arith.extui %11 : i1 to i32
    %c0_i32 = arith.constant 0 : i32
    %13 = arith.cmpi ne, %12, %c0_i32 : i32
    scf.if %13 {
      %20 = tpu.iota {dimensions = array<i32: 1>} : vector<16x64xi32>
      %c0_10 = arith.constant 0 : index
      %c0_11 = arith.constant 0 : index
      %c0_12 = arith.constant 0 : index
      %21 = vector.load %arg3[%c0_10, %c0_11, %c0_12] : memref<1x16x64xf32, #tpu.memory_space<vmem>>, vector<1x16x64xf32>
      %22 = vector.shape_cast %21 : vector<1x16x64xf32> to vector<16x64xf32>
      %c1_i32_13 = arith.constant 1 : i32
      %23 = tpu.dynamic_rotate %22 by %c1_i32_13 dim 1 : vector<16x64xf32>, i32 -> vector<16x64xf32>
      %c63_i32 = arith.constant 63 : i32
      %24 = tpu.dynamic_rotate %22 by %c63_i32 dim 1 : vector<16x64xf32>, i32 -> vector<16x64xf32>
      %c1_i32_14 = arith.constant 1 : i32
      %25 = vector.broadcast %c1_i32_14 : i32 to vector<16x64xi32>
      %26 = arith.andi %20, %25 : vector<16x64xi32>
      %c0_i32_15 = arith.constant 0 : i32
      %27 = vector.broadcast %c0_i32_15 : i32 to vector<16x64xi32>
      %28 = arith.cmpi ne, %26, %27 : vector<16x64xi32>
      %29 = arith.select %28, %23, %24 : vector<16x64xi1>, vector<16x64xf32>
      %c2_i32 = arith.constant 2 : i32
      %30 = tpu.dynamic_rotate %29 by %c2_i32 dim 1 : vector<16x64xf32>, i32 -> vector<16x64xf32>
      %c62_i32 = arith.constant 62 : i32
      %31 = tpu.dynamic_rotate %29 by %c62_i32 dim 1 : vector<16x64xf32>, i32 -> vector<16x64xf32>
      %c2_i32_16 = arith.constant 2 : i32
      %32 = vector.broadcast %c2_i32_16 : i32 to vector<16x64xi32>
      %33 = arith.andi %20, %32 : vector<16x64xi32>
      %c0_i32_17 = arith.constant 0 : i32
      %34 = vector.broadcast %c0_i32_17 : i32 to vector<16x64xi32>
      %35 = arith.cmpi ne, %33, %34 : vector<16x64xi32>
      %36 = arith.select %35, %30, %31 : vector<16x64xi1>, vector<16x64xf32>
      %c4_i32 = arith.constant 4 : i32
      %37 = tpu.dynamic_rotate %36 by %c4_i32 dim 1 : vector<16x64xf32>, i32 -> vector<16x64xf32>
      %c60_i32 = arith.constant 60 : i32
      %38 = tpu.dynamic_rotate %36 by %c60_i32 dim 1 : vector<16x64xf32>, i32 -> vector<16x64xf32>
      %c4_i32_18 = arith.constant 4 : i32
      %39 = vector.broadcast %c4_i32_18 : i32 to vector<16x64xi32>
      %40 = arith.andi %20, %39 : vector<16x64xi32>
      %c0_i32_19 = arith.constant 0 : i32
      %41 = vector.broadcast %c0_i32_19 : i32 to vector<16x64xi32>
      %42 = arith.cmpi ne, %40, %41 : vector<16x64xi32>
      %43 = arith.select %42, %37, %38 : vector<16x64xi1>, vector<16x64xf32>
      %c8_i32 = arith.constant 8 : i32
      %44 = tpu.dynamic_rotate %43 by %c8_i32 dim 1 : vector<16x64xf32>, i32 -> vector<16x64xf32>
      %c56_i32 = arith.constant 56 : i32
      %45 = tpu.dynamic_rotate %43 by %c56_i32 dim 1 : vector<16x64xf32>, i32 -> vector<16x64xf32>
      %c8_i32_20 = arith.constant 8 : i32
      %46 = vector.broadcast %c8_i32_20 : i32 to vector<16x64xi32>
      %47 = arith.andi %20, %46 : vector<16x64xi32>
      %c0_i32_21 = arith.constant 0 : i32
      %48 = vector.broadcast %c0_i32_21 : i32 to vector<16x64xi32>
      %49 = arith.cmpi ne, %47, %48 : vector<16x64xi32>
      %50 = arith.select %49, %44, %45 : vector<16x64xi1>, vector<16x64xf32>
      %c0_22 = arith.constant 0 : index
      %c0_23 = arith.constant 0 : index
      %c0_24 = arith.constant 0 : index
      %51 = vector.load %arg3[%c0_22, %c0_23, %c0_24] : memref<1x16x64xf32, #tpu.memory_space<vmem>>, vector<1x16x64xf32>
      %52 = vector.shape_cast %51 : vector<1x16x64xf32> to vector<16x64xf32>
      %53 = vector.shape_cast %50 : vector<16x64xf32> to vector<1x16x64xf32>
      tpu.vector_store %arg3[%c0_22, %c0_23, %c0_24], %53 {strides = array<i32>} : memref<1x16x64xf32, #tpu.memory_space<vmem>>, vector<1x16x64xf32>,
    } else {
    }
    %c1_i32_6 = arith.constant 1 : i32
    %14 = arith.cmpi eq, %3, %c1_i32_6 : i32
    %15 = arith.extui %14 : i1 to i32
    %c0_i32_7 = arith.constant 0 : i32
    %16 = arith.cmpi ne, %15, %c0_i32_7 : i32
    scf.if %16 {
      %20 = tpu.iota {dimensions = array<i32: 0>} : vector<16x64xi32>
      %c0_10 = arith.constant 0 : index
      %c0_11 = arith.constant 0 : index
      %c0_12 = arith.constant 0 : index
      %21 = vector.load %arg3[%c0_10, %c0_11, %c0_12] : memref<1x16x64xf32, #tpu.memory_space<vmem>>, vector<1x16x64xf32>
      %22 = vector.shape_cast %21 : vector<1x16x64xf32> to vector<16x64xf32>
      %c1_i32_13 = arith.constant 1 : i32
      %23 = tpu.dynamic_rotate %22 by %c1_i32_13 dim 0 : vector<16x64xf32>, i32 -> vector<16x64xf32>
      %c15_i32 = arith.constant 15 : i32
      %24 = tpu.dynamic_rotate %22 by %c15_i32 dim 0 : vector<16x64xf32>, i32 -> vector<16x64xf32>
      %c1_i32_14 = arith.constant 1 : i32
      %25 = vector.broadcast %c1_i32_14 : i32 to vector<16x64xi32>
      %26 = arith.andi %20, %25 : vector<16x64xi32>
      %c0_i32_15 = arith.constant 0 : i32
      %27 = vector.broadcast %c0_i32_15 : i32 to vector<16x64xi32>
      %28 = arith.cmpi ne, %26, %27 : vector<16x64xi32>
      %29 = arith.select %28, %23, %24 : vector<16x64xi1>, vector<16x64xf32>
      %c2_i32 = arith.constant 2 : i32
      %30 = tpu.dynamic_rotate %29 by %c2_i32 dim 0 : vector<16x64xf32>, i32 -> vector<16x64xf32>
      %c14_i32 = arith.constant 14 : i32
      %31 = tpu.dynamic_rotate %29 by %c14_i32 dim 0 : vector<16x64xf32>, i32 -> vector<16x64xf32>
      %c2_i32_16 = arith.constant 2 : i32
      %32 = vector.broadcast %c2_i32_16 : i32 to vector<16x64xi32>
      %33 = arith.andi %20, %32 : vector<16x64xi32>
      %c0_i32_17 = arith.constant 0 : i32
      %34 = vector.broadcast %c0_i32_17 : i32 to vector<16x64xi32>
      %35 = arith.cmpi ne, %33, %34 : vector<16x64xi32>
      %36 = arith.select %35, %30, %31 : vector<16x64xi1>, vector<16x64xf32>
      %c4_i32 = arith.constant 4 : i32
      %37 = tpu.dynamic_rotate %36 by %c4_i32 dim 0 : vector<16x64xf32>, i32 -> vector<16x64xf32>
      %c12_i32 = arith.constant 12 : i32
      %38 = tpu.dynamic_rotate %36 by %c12_i32 dim 0 : vector<16x64xf32>, i32 -> vector<16x64xf32>
      %c4_i32_18 = arith.constant 4 : i32
      %39 = vector.broadcast %c4_i32_18 : i32 to vector<16x64xi32>
      %40 = arith.andi %20, %39 : vector<16x64xi32>
      %c0_i32_19 = arith.constant 0 : i32
      %41 = vector.broadcast %c0_i32_19 : i32 to vector<16x64xi32>
      %42 = arith.cmpi ne, %40, %41 : vector<16x64xi32>
      %43 = arith.select %42, %37, %38 : vector<16x64xi1>, vector<16x64xf32>
      %c8_i32 = arith.constant 8 : i32
      %44 = tpu.dynamic_rotate %43 by %c8_i32 dim 0 : vector<16x64xf32>, i32 -> vector<16x64xf32>
      %c8_i32_20 = arith.constant 8 : i32
      %45 = tpu.dynamic_rotate %43 by %c8_i32_20 dim 0 : vector<16x64xf32>, i32 -> vector<16x64xf32>
      %c8_i32_21 = arith.constant 8 : i32
      %46 = vector.broadcast %c8_i32_21 : i32 to vector<16x64xi32>
      %47 = arith.andi %20, %46 : vector<16x64xi32>
      %c0_i32_22 = arith.constant 0 : i32
      %48 = vector.broadcast %c0_i32_22 : i32 to vector<16x64xi32>
      %49 = arith.cmpi ne, %47, %48 : vector<16x64xi32>
      %50 = arith.select %49, %44, %45 : vector<16x64xi1>, vector<16x64xf32>
      %c0_23 = arith.constant 0 : index
      %c0_24 = arith.constant 0 : index
      %c0_25 = arith.constant 0 : index
      %51 = vector.load %arg3[%c0_23, %c0_24, %c0_25] : memref<1x16x64xf32, #tpu.memory_space<vmem>>, vector<1x16x64xf32>
      %52 = vector.shape_cast %51 : vector<1x16x64xf32> to vector<16x64xf32>
      %53 = vector.shape_cast %50 : vector<16x64xf32> to vector<1x16x64xf32>
      tpu.vector_store %arg3[%c0_23, %c0_24, %c0_25], %53 {strides = array<i32>} : memref<1x16x64xf32, #tpu.memory_space<vmem>>, vector<1x16x64xf32>,
    } else {
    }
    %c1_i32_8 = arith.constant 1 : i32
    %17 = arith.cmpi eq, %5, %c1_i32_8 : i32
    %18 = arith.extui %17 : i1 to i32
    %c0_i32_9 = arith.constant 0 : i32
    %19 = arith.cmpi ne, %18, %c0_i32_9 : i32
    scf.if %19 {
      %c0_10 = arith.constant 0 : index
      %c0_11 = arith.constant 0 : index
      %c0_12 = arith.constant 0 : index
      %20 = vector.load %arg3[%c0_10, %c0_11, %c0_12] : memref<1x16x64xf32, #tpu.memory_space<vmem>>, vector<1x16x64xf32>
      %21 = vector.shape_cast %20 : vector<1x16x64xf32> to vector<16x64xf32>
      %22 = tpu.iota {dimensions = array<i32: 0>} : vector<16x64xi32>
      %23 = tpu.iota {dimensions = array<i32: 1>} : vector<16x64xi32>
      %c15_i32 = arith.constant 15 : i32
      %24 = vector.broadcast %c15_i32 : i32 to vector<16x64xi32>
      %25 = arith.andi %23, %24 : vector<16x64xi32>
      %c1_i32_13 = arith.constant 1 : i32
      %26 = tpu.dynamic_rotate %21 by %c1_i32_13 dim 0 : vector<16x64xf32>, i32 -> vector<16x64xf32>
      %c1_i32_14 = arith.constant 1 : i32
      %27 = vector.broadcast %c1_i32_14 : i32 to vector<16x64xi32>
      %28 = arith.cmpi sge, %22, %27 : vector<16x64xi32>
      %cst = arith.constant 0.000000e+00 : f32
      %29 = vector.broadcast %cst : f32 to vector<16x64xf32>
      %30 = arith.select %28, %26, %29 : vector<16x64xi1>, vector<16x64xf32>
      %c1_i32_15 = arith.constant 1 : i32
      %31 = tpu.dynamic_rotate %30 by %c1_i32_15 dim 1 : vector<16x64xf32>, i32 -> vector<16x64xf32>
      %c1_i32_16 = arith.constant 1 : i32
      %32 = vector.broadcast %c1_i32_16 : i32 to vector<16x64xi32>
      %33 = arith.cmpi sge, %25, %32 : vector<16x64xi32>
      %cst_17 = arith.constant 0.000000e+00 : f32
      %34 = vector.broadcast %cst_17 : f32 to vector<16x64xf32>
      %35 = arith.select %33, %31, %34 : vector<16x64xi1>, vector<16x64xf32>
      %c63_i32 = arith.constant 63 : i32
      %36 = tpu.dynamic_rotate %30 by %c63_i32 dim 1 : vector<16x64xf32>, i32 -> vector<16x64xf32>
      %c14_i32 = arith.constant 14 : i32
      %37 = vector.broadcast %c14_i32 : i32 to vector<16x64xi32>
      %38 = arith.cmpi sle, %25, %37 : vector<16x64xi32>
      %cst_18 = arith.constant 0.000000e+00 : f32
      %39 = vector.broadcast %cst_18 : f32 to vector<16x64xf32>
      %40 = arith.select %38, %36, %39 : vector<16x64xi1>, vector<16x64xf32>
      %c1_i32_19 = arith.constant 1 : i32
      %41 = tpu.dynamic_rotate %21 by %c1_i32_19 dim 1 : vector<16x64xf32>, i32 -> vector<16x64xf32>
      %c1_i32_20 = arith.constant 1 : i32
      %42 = vector.broadcast %c1_i32_20 : i32 to vector<16x64xi32>
      %43 = arith.cmpi sge, %25, %42 : vector<16x64xi32>
      %cst_21 = arith.constant 0.000000e+00 : f32
      %44 = vector.broadcast %cst_21 : f32 to vector<16x64xf32>
      %45 = arith.select %43, %41, %44 : vector<16x64xi1>, vector<16x64xf32>
      %c63_i32_22 = arith.constant 63 : i32
      %46 = tpu.dynamic_rotate %21 by %c63_i32_22 dim 1 : vector<16x64xf32>, i32 -> vector<16x64xf32>
      %c14_i32_23 = arith.constant 14 : i32
      %47 = vector.broadcast %c14_i32_23 : i32 to vector<16x64xi32>
      %48 = arith.cmpi sle, %25, %47 : vector<16x64xi32>
      %cst_24 = arith.constant 0.000000e+00 : f32
      %49 = vector.broadcast %cst_24 : f32 to vector<16x64xf32>
      %50 = arith.select %48, %46, %49 : vector<16x64xi1>, vector<16x64xf32>
      %c15_i32_25 = arith.constant 15 : i32
      %51 = tpu.dynamic_rotate %21 by %c15_i32_25 dim 0 : vector<16x64xf32>, i32 -> vector<16x64xf32>
      %c14_i32_26 = arith.constant 14 : i32
      %52 = vector.broadcast %c14_i32_26 : i32 to vector<16x64xi32>
      %53 = arith.cmpi sle, %22, %52 : vector<16x64xi32>
      %cst_27 = arith.constant 0.000000e+00 : f32
      %54 = vector.broadcast %cst_27 : f32 to vector<16x64xf32>
      %55 = arith.select %53, %51, %54 : vector<16x64xi1>, vector<16x64xf32>
      %c1_i32_28 = arith.constant 1 : i32
      %56 = tpu.dynamic_rotate %55 by %c1_i32_28 dim 1 : vector<16x64xf32>, i32 -> vector<16x64xf32>
      %c1_i32_29 = arith.constant 1 : i32
      %57 = vector.broadcast %c1_i32_29 : i32 to vector<16x64xi32>
      %58 = arith.cmpi sge, %25, %57 : vector<16x64xi32>
      %cst_30 = arith.constant 0.000000e+00 : f32
      %59 = vector.broadcast %cst_30 : f32 to vector<16x64xf32>
      %60 = arith.select %58, %56, %59 : vector<16x64xi1>, vector<16x64xf32>
      %c63_i32_31 = arith.constant 63 : i32
      %61 = tpu.dynamic_rotate %55 by %c63_i32_31 dim 1 : vector<16x64xf32>, i32 -> vector<16x64xf32>
      %c14_i32_32 = arith.constant 14 : i32
      %62 = vector.broadcast %c14_i32_32 : i32 to vector<16x64xi32>
      %63 = arith.cmpi sle, %25, %62 : vector<16x64xi32>
      %cst_33 = arith.constant 0.000000e+00 : f32
      %64 = vector.broadcast %cst_33 : f32 to vector<16x64xf32>
      %65 = arith.select %63, %61, %64 : vector<16x64xi1>, vector<16x64xf32>
      %66 = arith.minimumf %30, %40 : vector<16x64xf32>
      %67 = arith.maximumf %30, %40 : vector<16x64xf32>
      %68 = arith.minimumf %21, %50 : vector<16x64xf32>
      %69 = arith.maximumf %21, %50 : vector<16x64xf32>
      %70 = arith.minimumf %55, %65 : vector<16x64xf32>
      %71 = arith.maximumf %55, %65 : vector<16x64xf32>
      %72 = arith.minimumf %35, %66 : vector<16x64xf32>
      %73 = arith.maximumf %35, %66 : vector<16x64xf32>
      %74 = arith.minimumf %45, %68 : vector<16x64xf32>
      %75 = arith.maximumf %45, %68 : vector<16x64xf32>
      %76 = arith.minimumf %60, %70 : vector<16x64xf32>
      %77 = arith.maximumf %60, %70 : vector<16x64xf32>
      %78 = arith.minimumf %73, %67 : vector<16x64xf32>
      %79 = arith.maximumf %73, %67 : vector<16x64xf32>
      %80 = arith.minimumf %75, %69 : vector<16x64xf32>
      %81 = arith.maximumf %75, %69 : vector<16x64xf32>
      %82 = arith.minimumf %77, %71 : vector<16x64xf32>
      %83 = arith.maximumf %77, %71 : vector<16x64xf32>
      %84 = arith.maximumf %72, %74 : vector<16x64xf32>
      %85 = arith.minimumf %81, %83 : vector<16x64xf32>
      %86 = arith.minimumf %80, %82 : vector<16x64xf32>
      %87 = arith.maximumf %80, %82 : vector<16x64xf32>
      %88 = arith.maximumf %84, %76 : vector<16x64xf32>
      %89 = arith.maximumf %78, %86 : vector<16x64xf32>
      %90 = arith.minimumf %79, %85 : vector<16x64xf32>
      %91 = arith.minimumf %89, %87 : vector<16x64xf32>
      %92 = arith.minimumf %91, %90 : vector<16x64xf32>
      %93 = arith.maximumf %91, %90 : vector<16x64xf32>
      %94 = arith.maximumf %88, %92 : vector<16x64xf32>
      %95 = arith.minimumf %94, %93 : vector<16x64xf32>
      %c0_34 = arith.constant 0 : index
      %c0_35 = arith.constant 0 : index
      %c0_36 = arith.constant 0 : index
      %96 = vector.load %arg3[%c0_34, %c0_35, %c0_36] : memref<1x16x64xf32, #tpu.memory_space<vmem>>, vector<1x16x64xf32>
      %97 = vector.shape_cast %96 : vector<1x16x64xf32> to vector<16x64xf32>
      %98 = vector.shape_cast %95 : vector<16x64xf32> to vector<1x16x64xf32>
      tpu.vector_store %arg3[%c0_34, %c0_35, %c0_36], %98 {strides = array<i32>} : memref<1x16x64xf32, #tpu.memory_space<vmem>>, vector<1x16x64xf32>,
    } else {
    }
    return
  }
  func.func @transform_0(%arg0: i32, %arg1: memref<2x3xi32, #tpu.memory_space<smem>>) -> (i32, i32, i32) {
    %c0_i32 = arith.constant 0 : i32
    %c0_i32_0 = arith.constant 0 : i32
    %c0_i32_1 = arith.constant 0 : i32
    return %arg0, %c0_i32, %c0_i32_0 : i32, i32, i32
  }
  func.func @transform_1(%arg0: i32, %arg1: memref<2x3xi32, #tpu.memory_space<smem>>) -> (i32, i32, i32) {
    %c0_i32 = arith.constant 0 : i32
    %c0_i32_0 = arith.constant 0 : i32
    %c0_i32_1 = arith.constant 0 : i32
    return %arg0, %c0_i32, %c0_i32_0 : i32, i32, i32
  }
}

</mosaic_0001>

<llo_original>
// kernel: tpu_custom_call.1
$region0: #{tpu_custom_call.1}
  #allocation0 [shape = 'u32[]', space=smem, size = 0x4, offset = 0x4, fixed_abs, tag = 'smem constant byte address 0x4 - core index']
  #allocation1 [shape = 'u32[144,128]{1,0:T(1,128)}', space=vmem, size = 0x12000, scoped, tag = 'internal scratch']
  #allocation2 [shape = 's32[1]{0}', space=sflag, size = 0x4, scoped, tag = 'scoped memory for tpu_custom_call.1']
  #allocation3 [shape = 'u8[1024]{0}', space=smem, size = 0x400, scoped, tag = 'prefetched SMEM operand 0']
  %s0 = inlined_call_operand.hbm [shape: s32[2,3], index: 0, kind: input, shape index: {}]
  %s1 = inlined_call_operand.hbm [shape: f32[2,16,64], index: 1, kind: input, shape index: {}]
  %s2 = inlined_call_operand.hbm [shape: f32[2,16,64], index: 2, kind: output, shape index: {}]
  %s3 = sld [smem:[#allocation0]]
  $region53: #{tpu_custom_call.1} parent=0
    _
  %s5 = ssub.s32 1, %s3
  %s6 = scalar_select 0, %s5, %s3
  %8 = dma.hbm_to_smem %s0, 32, [#allocation3], [#allocation2]
  %9 = dma.done [#allocation2], 32
  %10 = sfence
  $region1: #{tpu_custom_call.1} parent=0
    #allocation4 [shape = 'u8[16384]{0}', space=vmem, size = 0x4000, scoped, tag = 'input window, operand 1']
    #allocation5 [shape = 's32[2]{0}', space=sflag, size = 0x8, scoped, tag = 'scoped memory for tpu_custom_call.1']
    #allocation6 [shape = 's32[2]{0}', space=sflag, size = 0x8, scoped, tag = 'scoped memory for tpu_custom_call.1']
    #allocation7 [shape = 'u8[16384]{0}', space=vmem, size = 0x4000, scoped, tag = 'output window, operand 0']
    %11 = vsyncpa [#allocation5], 0
    %s12 = scalar_lea.sflag [#allocation5], 1
    %13 = vsyncpa %s12, 0
    %14 = vsyncpa [#allocation6], 0
    %s15 = scalar_lea.sflag [#allocation6], 1
    %16 = vsyncpa %s15, 0
    loop: start=0, step=1, limit=4
    $region2: #{tpu_custom_call.1} parent=1 // loop_pre_header
      _
    $region3: #{tpu_custom_call.1} parent=1 // loop_header
      %s18 = sphi 0, %s22
      %p19 = scmp.ge.s32.totalorder %s18, 4
      %s28 = sphi 0, %s30
      %s31 = sphi 0, %s28
      %s32 = sphi 0, %s31
      %s48 = sphi 0, %s32
      %s54 = sphi 0, %s56
      %s57 = sphi 0, %s54
      %s58 = sphi 0, %s57
      %s74 = sphi 0, %s58
    $region4: #{tpu_custom_call.1} parent=1 // loop_header_branch
      %21 = sbr.rel (%p19) target = $region8
    $region5: #{tpu_custom_call.1} parent=1 // loop_body
      %s23 = ssub.s32 %s18, 1
      %s24 = ssub.s32 %s18, 2
      %s25 = sadd.s32 %s18, 1
      %s26 = ssub.s32 %s18, %s25
      %p27 = scmp.eq.s32.totalorder %s26, 0
      %s29 = sadd.s32 %s28, 1
      %s30 = scalar_select %p27, %s28, %s29
      %p33 = pneg %p27
      %p34 = scmp.eq.s32.totalorder %s18, 1
      %p35 = por %p33, %p34
      %p36 = scmp.ne.s32.totalorder %s28, %s31
      %p37 = scmp.eq.s32.totalorder %s18, 0
      %p38 = por %p36, %p37
      %p39 = scmp.ne.s32.totalorder %s28, %s31
      %p40 = scmp.eq.s32.totalorder %s23, 1
      %p41 = por %p39, %p40
      %p42 = scmp.ne.s32.totalorder %s31, %s32
      %p43 = scmp.eq.s32.totalorder %s23, 0
      %p44 = por %p42, %p43
      %p45 = scmp.ne.s32.totalorder %s31, %s32
      %p46 = scmp.eq.s32.totalorder %s24, 1
      %p47 = por %p45, %p46
      %p49 = scmp.ne.s32.totalorder %s32, %s48
      %p50 = scmp.eq.s32.totalorder %s24, 0
      %p51 = por %p49, %p50
      %s52 = ssub.s32 %s18, %s25
      %p53 = scmp.eq.s32.totalorder %s52, 0
      %s55 = sadd.s32 %s54, 1
      %s56 = scalar_select %p53, %s54, %s55
      %p59 = pneg %p53
      %p60 = scmp.eq.s32.totalorder %s18, 1
      %p61 = por %p59, %p60
      %p62 = scmp.ne.s32.totalorder %s54, %s57
      %p63 = scmp.eq.s32.totalorder %s18, 0
      %p64 = por %p62, %p63
      %p65 = scmp.ne.s32.totalorder %s54, %s57
      %p66 = scmp.eq.s32.totalorder %s23, 1
      %p67 = por %p65, %p66
      %p68 = scmp.ne.s32.totalorder %s57, %s58
      %p69 = scmp.eq.s32.totalorder %s23, 0
      %p70 = por %p68, %p69
      %p71 = scmp.ne.s32.totalorder %s57, %s58
      %p72 = scmp.eq.s32.totalorder %s24, 1
      %p73 = por %p71, %p72
      %p75 = scmp.ne.s32.totalorder %s58, %s74
      %p76 = scmp.eq.s32.totalorder %s24, 0
      %p77 = por %p75, %p76
      %p78 = scmp.le.s32.totalorder 1, %s18
      %p79 = scmp.lt.s32.totalorder %s18, 3
      %p80 = pnand %p78, %p79
      %p81 = pneg %p80
      // Predicated region
      $region9: #{tpu_custom_call.1} parent=5 // pred_check
        _
      $region10: #{tpu_custom_call.1} parent=5 // pred_check_branch
        %83 = sbr.rel (%p80) target = $region12
      $region11: #{tpu_custom_call.1} parent=5 // pred_region
        %s84 = ssub.s32 %s18, 1
      $region12: #{tpu_custom_call.1} parent=5 // pred_fallthru
        _
      %p85 = scmp.lt.s32.totalorder %s18, 2
      // Predicated region
      $region13: #{tpu_custom_call.1} parent=5 // pred_check
        %p86 = pneg %p85
      $region14: #{tpu_custom_call.1} parent=5 // pred_check_branch
        %88 = sbr.rel (%p86) target = $region16
      $region15: #{tpu_custom_call.1} parent=5 // pred_region
        // Predicated region
        $region17: #{tpu_custom_call.1} parent=15 // pred_check
          %p89 = pneg %p38
        $region18: #{tpu_custom_call.1} parent=15 // pred_check_branch
          %91 = sbr.rel (%p89) target = $region20
        $region19: #{tpu_custom_call.1} parent=15 // pred_region
          %s92 = sand.u32 %s28, 1
          %s93 = scalar_lea.sflag [#allocation5], %s92
          %s94 = sand.u32 %s28, 1
          %s95 = smul.addr %s94, 16
          %s96 = scalar_lea.vmem [#allocation4], %s95
          %s98 = ssub.s32 256, 256
          %99 = vsyncadd %s93, %s98
          %s100 = smul.addr %s18, 2
          %s101 = smul.addr %s100, 128
          %s102 = scalar_lea.hbm %s1, %s101
          %s103 = sshll.u32 %s96, 4
          %s104 = int_to_ptr.vmem [resolvable:$true] %s103
          %109 = dma.hbm_to_vmem [thread:$0]  %s102, 256, %s104, %s93, 128, 128, 8
        $region20: #{tpu_custom_call.1} parent=15 // pred_fallthru
          _
      $region16: #{tpu_custom_call.1} parent=5 // pred_fallthru
        _
      %p110 = scmp.le.s32.totalorder 1, %s18
      %p111 = scmp.lt.s32.totalorder %s18, 3
      %p112 = pnand %p110, %p111
      %p113 = pneg %p112
      // Predicated region
      $region21: #{tpu_custom_call.1} parent=5 // pred_check
        _
      $region22: #{tpu_custom_call.1} parent=5 // pred_check_branch
        %115 = sbr.rel (%p112) target = $region24
      $region23: #{tpu_custom_call.1} parent=5 // pred_region
        %s116 = ssub.s32 %s18, 1
        %s117 = sand.u32 %s31, 1
        %s118 = scalar_lea.sflag [#allocation5], %s117
        %s119 = sand.u32 %s31, 1
        %s120 = smul.addr %s119, 16
        %s121 = scalar_lea.vmem [#allocation4], %s120
        // Predicated region
        $region25: #{tpu_custom_call.1} parent=23 // pred_check
          %p122 = pneg %p44
        $region26: #{tpu_custom_call.1} parent=23 // pred_check_branch
          %124 = sbr.rel (%p122) target = $region28
        $region27: #{tpu_custom_call.1} parent=23 // pred_region
          %125 = dma.done %s118, 256
        $region28: #{tpu_custom_call.1} parent=23 // pred_fallthru
          _
        %s126 = sand.u32 %s31, 1
        %s127 = scalar_lea.sflag [#allocation5], %s126
        %s128 = sand.u32 %s31, 1
        %s129 = smul.addr %s128, 16
        %s130 = scalar_lea.vmem [#allocation4], %s129
        %p131 = pneg %p44
        %p132 = pneg %p41
        %p133 = pneg %p70
        %p134 = pneg %p67
        %s135 = sand.u32 %s57, 1
        %s136 = scalar_lea.sflag [#allocation6], %s135
        %s137 = sand.u32 %s57, 1
        %s138 = smul.addr %s137, 16
        %s139 = scalar_lea.vmem [#allocation7], %s138
        %s140 = smul.u32 %s23, 128
        %s141 = sld [smem:[#allocation3 + %s140]]
        %s142 = sadd.s32 %s140, 1
        %s143 = sld [smem:[#allocation3 + %s142]]
        %s144 = sadd.s32 %s140, 2
        %s145 = sld [smem:[#allocation3 + %s144]]
        %v146 = vld [vmem:[%s121] sm:$0xff]
        %v147 = vld [vmem:[%s121 + $0x8] sm:$0xff]
        %vm148 = vcmask 523264
        %149 = vst.msk [vmem:[%s139] sm:$0xff] %vm148, %v146
        %150 = vst.msk [vmem:[%s139 + $0x8] sm:$0xff] %vm148, %v147
        %p151 = scmp.eq.s32.totalorder %s141, 1
        // Predicated region
        $region29: #{tpu_custom_call.1} parent=23 // pred_check
          %p152 = pneg %p151
        $region30: #{tpu_custom_call.1} parent=23 // pred_check_branch
          %154 = sbr.rel (%p152) target = $region32
        $region31: #{tpu_custom_call.1} parent=23 // pred_region
          %v155 = vlaneseq
          %v156 = vand.u32 %v155, 127
          %v157 = vld [vmem:[%s139] sm:$0xff]
          %v158 = vld [vmem:[%s139 + $0x8] sm:$0xff]
          %vm159 = vcmask 1048064
          %160 = vrot.lane.b32.xlu0 %v157, 64
          %v161 = vpop.permute.xlu0 %160
          %v162 = vsel %vm159, %v161, %v157
          %163 = vrot.lane.b32.xlu0 %v158, 64
          %v164 = vpop.permute.xlu0 %163
          %v165 = vsel %vm159, %v164, %v158
          %166 = vrot.lane.b32.xlu0 %v162, 64
          %v167 = vpop.permute.xlu0 %166
          %168 = vrot.lane.b32.xlu0 %v165, 64
          %v169 = vpop.permute.xlu0 %168
          %v170 = vsel %vm159, %v167, %v157
          %v171 = vsel %vm159, %v169, %v158
          %v172 = vand.u32 %v156, 1
          %vm173 = vcmp.ne.s32.totalorder %v172, 0
          %176 = vrot.lane.b32.xlu0 %v170, 65
          %v177 = vpop.permute.xlu0 %176
          %178 = vrot.lane.b32.xlu0 %v171, 65
          %v179 = vpop.permute.xlu0 %178
          %182 = vrot.lane.b32.xlu0 %v170, 127
          %v183 = vpop.permute.xlu0 %182
          %184 = vrot.lane.b32.xlu0 %v171, 127
          %v185 = vpop.permute.xlu0 %184
          %v188 = vsel %vm173, %v177, %v183
          %v189 = vsel %vm173, %v179, %v185
          %190 = vrot.lane.b32.xlu0 %v188, 64
          %v191 = vpop.permute.xlu0 %190
          %v192 = vsel %vm159, %v191, %v188
          %193 = vrot.lane.b32.xlu0 %v189, 64
          %v194 = vpop.permute.xlu0 %193
          %v195 = vsel %vm159, %v194, %v189
          %196 = vrot.lane.b32.xlu0 %v192, 64
          %v197 = vpop.permute.xlu0 %196
          %198 = vrot.lane.b32.xlu0 %v195, 64
          %v199 = vpop.permute.xlu0 %198
          %v200 = vsel %vm159, %v197, %v188
          %v201 = vsel %vm159, %v199, %v189
          %v202 = vand.u32 %v156, 2
          %vm203 = vcmp.ne.s32.totalorder %v202, 0
          %206 = vrot.lane.b32.xlu0 %v200, 66
          %v207 = vpop.permute.xlu0 %206
          %208 = vrot.lane.b32.xlu0 %v201, 66
          %v209 = vpop.permute.xlu0 %208
          %212 = vrot.lane.b32.xlu0 %v200, 126
          %v213 = vpop.permute.xlu0 %212
          %214 = vrot.lane.b32.xlu0 %v201, 126
          %v215 = vpop.permute.xlu0 %214
          %v218 = vsel %vm203, %v207, %v213
          %v219 = vsel %vm203, %v209, %v215
          %220 = vrot.lane.b32.xlu0 %v218, 64
          %v221 = vpop.permute.xlu0 %220
          %v222 = vsel %vm159, %v221, %v218
          %223 = vrot.lane.b32.xlu0 %v219, 64
          %v224 = vpop.permute.xlu0 %223
          %v225 = vsel %vm159, %v224, %v219
          %226 = vrot.lane.b32.xlu0 %v222, 64
          %v227 = vpop.permute.xlu0 %226
          %228 = vrot.lane.b32.xlu0 %v225, 64
          %v229 = vpop.permute.xlu0 %228
          %v230 = vsel %vm159, %v227, %v218
          %v231 = vsel %vm159, %v229, %v219
          %v232 = vand.u32 %v156, 4
          %vm233 = vcmp.ne.s32.totalorder %v232, 0
          %236 = vrot.lane.b32.xlu0 %v230, 68
          %v237 = vpop.permute.xlu0 %236
          %238 = vrot.lane.b32.xlu0 %v231, 68
          %v239 = vpop.permute.xlu0 %238
          %242 = vrot.lane.b32.xlu0 %v230, 124
          %v243 = vpop.permute.xlu0 %242
          %244 = vrot.lane.b32.xlu0 %v231, 124
          %v245 = vpop.permute.xlu0 %244
          %v248 = vsel %vm233, %v237, %v243
          %v249 = vsel %vm233, %v239, %v245
          %250 = vrot.lane.b32.xlu0 %v248, 64
          %v251 = vpop.permute.xlu0 %250
          %v252 = vsel %vm159, %v251, %v248
          %253 = vrot.lane.b32.xlu0 %v249, 64
          %v254 = vpop.permute.xlu0 %253
          %v255 = vsel %vm159, %v254, %v249
          %256 = vrot.lane.b32.xlu0 %v252, 64
          %v257 = vpop.permute.xlu0 %256
          %258 = vrot.lane.b32.xlu0 %v255, 64
          %v259 = vpop.permute.xlu0 %258
          %v260 = vsel %vm159, %v257, %v248
          %v261 = vsel %vm159, %v259, %v249
          %v262 = vand.u32 %v156, 8
          %vm263 = vcmp.ne.s32.totalorder %v262, 0
          %266 = vrot.lane.b32.xlu0 %v260, 72
          %v267 = vpop.permute.xlu0 %266
          %268 = vrot.lane.b32.xlu0 %v261, 72
          %v269 = vpop.permute.xlu0 %268
          %272 = vrot.lane.b32.xlu0 %v260, 120
          %v273 = vpop.permute.xlu0 %272
          %274 = vrot.lane.b32.xlu0 %v261, 120
          %v275 = vpop.permute.xlu0 %274
          %v278 = vsel %vm263, %v267, %v273
          %v279 = vsel %vm263, %v269, %v275
          %280 = vst.msk [vmem:[%s139] sm:$0xff] %vm148, %v278
          %281 = vst.msk [vmem:[%s139 + $0x8] sm:$0xff] %vm148, %v279
        $region32: #{tpu_custom_call.1} parent=23 // pred_fallthru
          _
        %p282 = scmp.eq.s32.totalorder %s143, 1
        // Predicated region
        $region33: #{tpu_custom_call.1} parent=23 // pred_check
          %p283 = pneg %p282
        $region34: #{tpu_custom_call.1} parent=23 // pred_check_branch
          %285 = sbr.rel (%p283) target = $region36
        $region35: #{tpu_custom_call.1} parent=23 // pred_region
          %v286 = vlaneseq
          %v287 = vshrl.u32 %v286, 7
          %v288 = vadd.s32 %v287, 8
          %v289 = vld [vmem:[%s139] sm:$0xff]
          %v290 = vld [vmem:[%s139 + $0x8] sm:$0xff]
          %v291 = vrot.slane %v289, 7
          %v292 = vrot.slane %v290, 7
          %vm293 = vcmp.lt.s32.totalorder %v287, 1
          %v294 = vsel %vm293, %v291, %v292
          %v295 = vsel %vm293, %v292, %v291
          %v296 = vrot.slane %v289, 1
          %v297 = vrot.slane %v290, 1
          %vm298 = vcmp.lt.s32.totalorder %v287, 7
          %v299 = vsel %vm298, %v296, %v297
          %v300 = vsel %vm298, %v297, %v296
          %v301 = vand.u32 %v287, 1
          %v302 = vand.u32 %v288, 1
          %vm303 = vcmp.ne.s32.totalorder %v301, 0
          %vm304 = vcmp.ne.s32.totalorder %v302, 0
          %v305 = vsel %vm303, %v295, %v299
          %v306 = vsel %vm304, %v294, %v300
          %v307 = vrot.slane %v305, 6
          %v308 = vrot.slane %v306, 6
          %vm309 = vcmp.lt.s32.totalorder %v287, 2
          %v310 = vsel %vm309, %v307, %v308
          %v311 = vsel %vm309, %v308, %v307
          %v312 = vrot.slane %v305, 2
          %v313 = vrot.slane %v306, 2
          %vm314 = vcmp.lt.s32.totalorder %v287, 6
          %v315 = vsel %vm314, %v312, %v313
          %v316 = vsel %vm314, %v313, %v312
          %v317 = vand.u32 %v287, 2
          %v318 = vand.u32 %v288, 2
          %vm319 = vcmp.ne.s32.totalorder %v317, 0
          %vm320 = vcmp.ne.s32.totalorder %v318, 0
          %v321 = vsel %vm319, %v311, %v315
          %v322 = vsel %vm320, %v310, %v316
          %v323 = vrot.slane %v321, 4
          %v324 = vrot.slane %v322, 4
          %vm325 = vcmp.lt.s32.totalorder %v287, 4
          %v326 = vsel %vm325, %v323, %v324
          %v327 = vsel %vm325, %v324, %v323
          %v328 = vand.u32 %v287, 4
          %v329 = vand.u32 %v288, 4
          %vm330 = vcmp.ne.s32.totalorder %v328, 0
          %vm331 = vcmp.ne.s32.totalorder %v329, 0
          %v332 = vsel %vm330, %v327, %v326
          %v333 = vsel %vm331, %v326, %v327
          %334 = vst.msk [vmem:[%s139] sm:$0xff] %vm148, %v333
          %335 = vst.msk [vmem:[%s139 + $0x8] sm:$0xff] %vm148, %v332
        $region36: #{tpu_custom_call.1} parent=23 // pred_fallthru
          _
        %p336 = scmp.eq.s32.totalorder %s145, 1
        // Predicated region
        $region37: #{tpu_custom_call.1} parent=23 // pred_check
          %p337 = pneg %p336
        $region38: #{tpu_custom_call.1} parent=23 // pred_check_branch
          %339 = sbr.rel (%p337) target = $region40
        $region39: #{tpu_custom_call.1} parent=23 // pred_region
          %v340 = vld [vmem:[%s139] sm:$0xff]
          %v341 = vld [vmem:[%s139 + $0x8] sm:$0xff]
          %v342 = vlaneseq
          %v343 = vshrl.u32 %v342, 7
          %v344 = vadd.s32 %v343, 8
          %v345 = vlaneseq
          %v346 = vand.u32 %v345, 127
          %v347 = vand.u32 %v346, 15
          %v348 = vrot.slane %v340, 7
          %v349 = vrot.slane %v341, 7
          %vm350 = vcmp.lt.s32.totalorder %v343, 1
          %v351 = vsel %vm350, %v348, %v349
          %v352 = vsel %vm350, %v349, %v348
          %vm353 = vcmp.ge.s32.totalorder %v343, 1
          %vm354 = vcmp.ge.s32.totalorder %v344, 1
          %v355 = vsel %vm353, %v352, 0.0
          %v356 = vsel %vm354, %v351, 0.0
          %vm357 = vcmask 1048064
          %358 = vrot.lane.b32.xlu0 %v355, 64
          %v359 = vpop.permute.xlu0 %358
          %v360 = vsel %vm357, %v359, %v355
          %361 = vrot.lane.b32.xlu0 %v356, 64
          %v362 = vpop.permute.xlu0 %361
          %v363 = vsel %vm357, %v362, %v356
          %364 = vrot.lane.b32.xlu0 %v360, 64
          %v365 = vpop.permute.xlu0 %364
          %366 = vrot.lane.b32.xlu0 %v363, 64
          %v367 = vpop.permute.xlu0 %366
          %v368 = vsel %vm357, %v365, %v355
          %v369 = vsel %vm357, %v367, %v356
          %vm370 = vcmp.ge.s32.totalorder %v347, 1
          %373 = vrot.lane.b32.xlu0 %v368, 65
          %v374 = vpop.permute.xlu0 %373
          %375 = vrot.lane.b32.xlu0 %v369, 65
          %v376 = vpop.permute.xlu0 %375
          %v379 = vsel %vm370, %v374, 0.0
          %v380 = vsel %vm370, %v376, 0.0
          %vm381 = vcmp.le.s32.totalorder %v347, 14
          %382 = vrot.lane.b32.xlu0 %v368, 127
          %v383 = vpop.permute.xlu0 %382
          %384 = vrot.lane.b32.xlu0 %v369, 127
          %v385 = vpop.permute.xlu0 %384
          %v388 = vsel %vm381, %v383, 0.0
          %v389 = vsel %vm381, %v385, 0.0
          %390 = vrot.lane.b32.xlu0 %v340, 64
          %v391 = vpop.permute.xlu0 %390
          %v392 = vsel %vm357, %v391, %v340
          %393 = vrot.lane.b32.xlu0 %v341, 64
          %v394 = vpop.permute.xlu0 %393
          %v395 = vsel %vm357, %v394, %v341
          %396 = vrot.lane.b32.xlu0 %v392, 64
          %v397 = vpop.permute.xlu0 %396
          %398 = vrot.lane.b32.xlu0 %v395, 64
          %v399 = vpop.permute.xlu0 %398
          %v400 = vsel %vm357, %v397, %v340
          %v401 = vsel %vm357, %v399, %v341
          %404 = vrot.lane.b32.xlu0 %v400, 65
          %v405 = vpop.permute.xlu0 %404
          %406 = vrot.lane.b32.xlu0 %v401, 65
          %v407 = vpop.permute.xlu0 %406
          %v410 = vsel %vm370, %v405, 0.0
          %v411 = vsel %vm370, %v407, 0.0
          %412 = vrot.lane.b32.xlu0 %v400, 127
          %v413 = vpop.permute.xlu0 %412
          %414 = vrot.lane.b32.xlu0 %v401, 127
          %v415 = vpop.permute.xlu0 %414
          %v418 = vsel %vm381, %v413, 0.0
          %v419 = vsel %vm381, %v415, 0.0
          %v420 = vrot.slane %v340, 1
          %v421 = vrot.slane %v341, 1
          %vm422 = vcmp.lt.s32.totalorder %v343, 7
          %v423 = vsel %vm422, %v420, %v421
          %v424 = vsel %vm422, %v421, %v420
          %vm425 = vcmp.le.s32.totalorder %v343, 14
          %vm426 = vcmp.le.s32.totalorder %v344, 14
          %v427 = vsel %vm425, %v423, 0.0
          %v428 = vsel %vm426, %v424, 0.0
          %429 = vrot.lane.b32.xlu0 %v427, 64
          %v430 = vpop.permute.xlu0 %429
          %v431 = vsel %vm357, %v430, %v427
          %432 = vrot.lane.b32.xlu0 %v428, 64
          %v433 = vpop.permute.xlu0 %432
          %v434 = vsel %vm357, %v433, %v428
          %435 = vrot.lane.b32.xlu0 %v431, 64
          %v436 = vpop.permute.xlu0 %435
          %437 = vrot.lane.b32.xlu0 %v434, 64
          %v438 = vpop.permute.xlu0 %437
          %v439 = vsel %vm357, %v436, %v427
          %v440 = vsel %vm357, %v438, %v428
          %443 = vrot.lane.b32.xlu0 %v439, 65
          %v444 = vpop.permute.xlu0 %443
          %445 = vrot.lane.b32.xlu0 %v440, 65
          %v446 = vpop.permute.xlu0 %445
          %v449 = vsel %vm370, %v444, 0.0
          %v450 = vsel %vm370, %v446, 0.0
          %451 = vrot.lane.b32.xlu0 %v439, 127
          %v452 = vpop.permute.xlu0 %451
          %453 = vrot.lane.b32.xlu0 %v440, 127
          %v454 = vpop.permute.xlu0 %453
          %v457 = vsel %vm381, %v452, 0.0
          %v458 = vsel %vm381, %v454, 0.0
          %v459 = vmin.f32 %v355, %v388
          %v460 = vmin.f32 %v356, %v389
          %v461 = vmax.f32 %v355, %v388
          %v462 = vmax.f32 %v356, %v389
          %v463 = vmin.f32 %v340, %v418
          %v464 = vmin.f32 %v341, %v419
          %v465 = vmax.f32 %v340, %v418
          %v466 = vmax.f32 %v341, %v419
          %v467 = vmin.f32 %v427, %v457
          %v468 = vmin.f32 %v428, %v458
          %v469 = vmax.f32 %v427, %v457
          %v470 = vmax.f32 %v428, %v458
          %v471 = vmin.f32 %v379, %v459
          %v472 = vmin.f32 %v380, %v460
          %v473 = vmax.f32 %v379, %v459
          %v474 = vmax.f32 %v380, %v460
          %v475 = vmin.f32 %v410, %v463
          %v476 = vmin.f32 %v411, %v464
          %v477 = vmax.f32 %v410, %v463
          %v478 = vmax.f32 %v411, %v464
          %v479 = vmin.f32 %v449, %v467
          %v480 = vmin.f32 %v450, %v468
          %v481 = vmax.f32 %v449, %v467
          %v482 = vmax.f32 %v450, %v468
          %v483 = vmin.f32 %v473, %v461
          %v484 = vmin.f32 %v474, %v462
          %v485 = vmax.f32 %v473, %v461
          %v486 = vmax.f32 %v474, %v462
          %v487 = vmin.f32 %v477, %v465
          %v488 = vmin.f32 %v478, %v466
          %v489 = vmax.f32 %v477, %v465
          %v490 = vmax.f32 %v478, %v466
          %v491 = vmin.f32 %v481, %v469
          %v492 = vmin.f32 %v482, %v470
          %v493 = vmax.f32 %v481, %v469
          %v494 = vmax.f32 %v482, %v470
          %v495 = vmax.f32 %v471, %v475
          %v496 = vmax.f32 %v472, %v476
          %v497 = vmin.f32 %v489, %v493
          %v498 = vmin.f32 %v490, %v494
          %v499 = vmin.f32 %v487, %v491
          %v500 = vmin.f32 %v488, %v492
          %v501 = vmax.f32 %v487, %v491
          %v502 = vmax.f32 %v488, %v492
          %v503 = vmax.f32 %v495, %v479
          %v504 = vmax.f32 %v496, %v480
          %v505 = vmax.f32 %v483, %v499
          %v506 = vmax.f32 %v484, %v500
          %v507 = vmin.f32 %v485, %v497
          %v508 = vmin.f32 %v486, %v498
          %v509 = vmin.f32 %v505, %v501
          %v510 = vmin.f32 %v506, %v502
          %v511 = vmin.f32 %v509, %v507
          %v512 = vmin.f32 %v510, %v508
          %v513 = vmax.f32 %v509, %v507
          %v514 = vmax.f32 %v510, %v508
          %v515 = vmax.f32 %v503, %v511
          %v516 = vmax.f32 %v504, %v512
          %v517 = vmin.f32 %v515, %v513
          %v518 = vmin.f32 %v516, %v514
          %519 = vst.msk [vmem:[%s139] sm:$0xff] %vm148, %v517
          %520 = vst.msk [vmem:[%s139 + $0x8] sm:$0xff] %vm148, %v518
        $region40: #{tpu_custom_call.1} parent=23 // pred_fallthru
          _
        %s521 = sand.u32 %s57, 1
        %s522 = scalar_lea.sflag [#allocation6], %s521
        %s523 = sand.u32 %s57, 1
        %s524 = smul.addr %s523, 16
        %s525 = scalar_lea.vmem [#allocation7], %s524
        // Predicated region
        $region41: #{tpu_custom_call.1} parent=23 // pred_check
          %p526 = pneg %p67
        $region42: #{tpu_custom_call.1} parent=23 // pred_check_branch
          %528 = sbr.rel (%p526) target = $region44
        $region43: #{tpu_custom_call.1} parent=23 // pred_region
          %s530 = ssub.s32 256, 256
          %531 = vsyncadd %s522, %s530
          %s532 = smul.addr %s23, 2
          %s533 = smul.addr %s532, 128
          %s534 = scalar_lea.hbm %s2, %s533
          %s535 = sshll.u32 %s525, 4
          %s536 = int_to_ptr.vmem [resolvable:$true] %s535
          %541 = dma.vmem_to_hbm [thread:$0]  %s536, 256, %s534, %s522, 128, 128, 8
        $region44: #{tpu_custom_call.1} parent=23 // pred_fallthru
          _
      $region24: #{tpu_custom_call.1} parent=5 // pred_fallthru
        _
      %p542 = scmp.le.s32.totalorder 2, %s18
      // Predicated region
      $region45: #{tpu_custom_call.1} parent=5 // pred_check
        %p543 = pneg %p542
      $region46: #{tpu_custom_call.1} parent=5 // pred_check_branch
        %545 = sbr.rel (%p543) target = $region48
      $region47: #{tpu_custom_call.1} parent=5 // pred_region
        %s546 = ssub.s32 %s18, 2
        // Predicated region
        $region49: #{tpu_custom_call.1} parent=47 // pred_check
          %p547 = pneg %p73
        $region50: #{tpu_custom_call.1} parent=47 // pred_check_branch
          %549 = sbr.rel (%p547) target = $region52
        $region51: #{tpu_custom_call.1} parent=47 // pred_region
          %s550 = sand.u32 %s58, 1
          %s551 = scalar_lea.sflag [#allocation6], %s550
          %s552 = sand.u32 %s58, 1
          %s553 = smul.addr %s552, 16
          %s554 = scalar_lea.vmem [#allocation7], %s553
          %555 = dma.done %s551, 256
        $region52: #{tpu_custom_call.1} parent=47 // pred_fallthru
          _
      $region48: #{tpu_custom_call.1} parent=5 // pred_fallthru
        _
    $region6: #{tpu_custom_call.1} parent=1 // loop_footer
      %s22 = sadd.s32 1, %s18
    $region7: #{tpu_custom_call.1} parent=1 // loop_footer_branch
      %17 = sbr.rel target = $region3
    $region8: #{tpu_custom_call.1} parent=1 // loop_exit
      _
    %556 = vsyncpa [#allocation5], 1
    %s557 = scalar_lea.sflag [#allocation5], 1
    %558 = vsyncpa %s557, 1
    %559 = vsyncpa [#allocation6], 1
    %s560 = scalar_lea.sflag [#allocation6], 1
    %561 = vsyncpa %s560, 1

</llo_original>
